<compile_context>
chip_gen: v6e
topology: v6e:2x2x1
jax: 0.10.0
libtpu: 0.0.40
codegen_flags: <defaults>
</compile_context>

<pallas_src>
import functools

import jax
import jax.numpy as jnp
from jax.experimental import pallas as pl
from jax.experimental.pallas import tpu as pltpu


_X_BUFFERS = 3  # pipeline depth requested for the streamed input


def _round_up(x: int, m: int) -> int:
    return (x + m - 1) // m * m


def _cdiv(a: int, b: int) -> int:
    return (a + b - 1) // b


def _pad_to(a, shape):
    pads = [(0, s - d) for d, s in zip(a.shape, shape)]
    if all(p == (0, 0) for p in pads):
        return a
    return jnp.pad(a, pads)


def _vmem_capacity_bytes() -> int:
    """Best-effort per-core VMEM capacity.

    Falls back to the smallest current generation (v7x: 64 MiB per TC) so all
    derived budgets are safe even if the query is unavailable."""
    try:
        info = pltpu.get_tpu_info()
        for attr in ("vmem_capacity_bytes", "vmem_bytes", "vmem_size_bytes"):
            v = getattr(info, attr, None)
            if v:
                return int(v)
    except Exception:
        pass
    return 64 << 20


def _choose_tiles(B, C_pad, HW, itemsize, input_budget, split_batch,
                  spatial_tile_cap=None):
    """Pick (TB, THW): batch tile (multiple of 8) and spatial tile (mult of 128).

    Grows THW (up to the full spatial row) before touching TB, balances the
    spatial steps to avoid padding blowup, and optionally caps TB so that
    there are >=2 batch tiles (keeps both v7x TensorCores fed)."""
    HW128 = _round_up(HW, 128)
    B8 = _round_up(B, 8)
    TB = min(B8, 128)
    if split_batch and B8 >= 16:
        # Ensure >=2 batch tiles so the "parallel" batch axis feeds both TCs.
        TB = min(TB, _round_up(_cdiv(B8, 2), 8))

    def budget_thw(tb):
        per_lane = tb * C_pad * itemsize * _X_BUFFERS
        return max((input_budget // per_lane) // 128 * 128, 0)

    thw_cap = budget_thw(TB)
    while thw_cap < 128 and TB > 8:
        TB = max(8, _round_up(TB // 2, 8))
        thw_cap = budget_thw(TB)
    thw_cap = max(thw_cap, 128)
    if spatial_tile_cap is not None:
        thw_cap = max(128, min(thw_cap, _round_up(int(spatial_tile_cap), 128)))
    thw_cap = min(thw_cap, HW128)

    # Balance spatial steps: avoids a THW just under HW forcing ~2x padded
    # bytes (e.g. HW=36864 with a 34048 budget -> two 18432 tiles, no waste).
    steps = _cdiv(HW128, thw_cap)
    THW = _round_up(_cdiv(HW128, steps), 128)
    return TB, THW


def _model_kernel(x_ref, w1_ref, b1_ref, w2_ref, b2_ref, w3_ref, b3_ref,
                  o_ref, acc_ref, *, inv_hw: float):
    # grid = (batch_tiles, spatial_tiles); spatial (reduction) axis is last.
    k = pl.program_id(1)

    @pl.when(k == 0)
    def _init():
        # Per-core scratch under megacore sharding of the parallel batch axis.
        acc_ref[...] = jnp.zeros_like(acc_ref)

    # Streaming partial sum for AdaptiveAvgPool2d((1,1)).
    # Zero-padded spatial lanes / channels contribute 0, so padding is inert.
    # Widen to f32 only after the DMA (keeps HBM bytes at the input dtype).
    x = x_ref[...].astype(jnp.float32)            # [TB, C_pad, THW]
    acc_ref[...] += jnp.sum(x, axis=-1)           # [TB, C_pad]

    @pl.when(k == pl.num_programs(1) - 1)
    def _finalize():
        pooled = acc_ref[...] * inv_hw            # mean scale folded in once
        w_dt = w1_ref.dtype                       # f32 or bf16 MXU path
        # fc1 + ReLU  (Dropout == identity in eval mode)
        h1 = jnp.dot(pooled.astype(w_dt), w1_ref[...],
                     preferred_element_type=jnp.float32) + b1_ref[...]
        h1 = jnp.maximum(h1, 0.0)
        # fc2 + ReLU
        h2 = jnp.dot(h1.astype(w_dt), w2_ref[...],
                     preferred_element_type=jnp.float32) + b2_ref[...]
        h2 = jnp.maximum(h2, 0.0)
        # fc3 (logits) — single fused, unmasked, lane-dense output store.
        out = jnp.dot(h2.astype(w_dt), w3_ref[...],
                      preferred_element_type=jnp.float32) + b3_ref[...]
        o_ref[...] = out.astype(o_ref.dtype)


def model_forward(x_nchw, params, *, weight_dtype=jnp.float32,
                  spatial_tile=None):
    """x_nchw: [B, C, H, W]. params: dict of w1,b1,w2,b2,w3,b3 ([in,out] weights).

    weight_dtype: jnp.float32 (exact) or jnp.bfloat16 (halves weight DMA /
    resident VMEM; worthwhile for large fc_dim). spatial_tile: optional cap on
    the spatial tile size (tuning/testing knob)."""
    B, C, H, W = x_nchw.shape
    HW = H * W
    w1, b1 = params["w1"], params["b1"]
    w2, b2 = params["w2"], params["b2"]
    w3, b3 = params["w3"], params["b3"]
    assert w1.shape[0] == C, "features=Identity => conv_dim must equal input channels"
    fc_dim = w1.shape[1]
    num_classes = w3.shape[1]

    itemsize = jnp.dtype(x_nchw.dtype).itemsize
    w_itemsize = jnp.dtype(weight_dtype).itemsize
    C_pad = _round_up(C, 8)            # sublane-dense streamed tiles
    FCp = _round_up(fc_dim, 128)       # lane-dense hidden width
    NCp = _round_up(num_classes, 128)  # lane-dense output -> unmasked stores

    w_bytes = ((C_pad * FCp + FCp * FCp + FCp * NCp) * w_itemsize
               + (2 * FCp + NCp) * 4)

    # Generation-aware budgets.
    vmem_cap = _vmem_capacity_bytes()
    two_tc = vmem_cap <= (96 << 20)                 # v7x heuristic (64 MiB/TC)
    vmem_ceiling = max(min(int(vmem_cap * 0.85), 112 << 20), 32 << 20)
    # Conservative resident footprint (weights counted double-buffered in case
    # the Buffered(1) hint is unavailable) + bounds for output/accumulator.
    resident = 2 * w_bytes + 2 * 128 * NCp * 4 + 128 * max(C_pad, 128) * 4
    input_budget = max(min(vmem_ceiling - resident - (4 << 20),
                           int(0.5 * vmem_cap)), 3 << 20)

    TB, THW = _choose_tiles(B, C_pad, HW, itemsize, input_budget, two_tc,
                            spatial_tile)
    B_pad = _round_up(B, TB)
    HW_pad = _round_up(HW, THW)

    # Zero padding everywhere is mathematically inert (zeros through sum /
    # matmul / ReLU); padded rows/cols are sliced off below.
    x3 = _pad_to(x_nchw.reshape(B, C, HW), (B_pad, C_pad, HW_pad))
    w1p = _pad_to(w1, (C_pad, FCp)).astype(weight_dtype)
    w2p = _pad_to(w2, (FCp, FCp)).astype(weight_dtype)
    w3p = _pad_to(w3, (FCp, NCp)).astype(weight_dtype)
    b1p = _pad_to(b1.reshape(1, -1), (1, FCp)).astype(jnp.float32)
    b2p = _pad_to(b2.reshape(1, -1), (1, FCp)).astype(jnp.float32)
    b3p = _pad_to(b3.reshape(1, -1), (1, NCp)).astype(jnp.float32)

    grid = (B_pad // TB, HW_pad // THW)

    # VMEM accounting for the compiler limit (stays under the generation cap).
    in_tile = TB * C_pad * THW * itemsize
    out_bytes = TB * NCp * 4
    acc_bytes = TB * max(C_pad, 128) * 4
    need = _X_BUFFERS * in_tile + 2 * w_bytes + 2 * out_bytes + acc_bytes
    vmem_limit = int(min(max(int(need * 1.25), 32 << 20), vmem_ceiling))

    flops = 2 * B_pad * (C_pad * FCp + FCp * FCp + FCp * NCp) + B_pad * C_pad * HW_pad
    bytes_accessed = (x3.size * itemsize
                      + (w1p.size + w2p.size + w3p.size) * w_itemsize
                      + (b1p.size + b2p.size + b3p.size) * 4
                      + B_pad * NCp * 4)

    kernel = functools.partial(_model_kernel, inv_hw=1.0 / float(HW))

    def _spec(shape, index_map, bufs, use_pm):
        if use_pm and bufs is not None and hasattr(pl, "Buffered"):
            try:
                return pl.BlockSpec(shape, index_map,
                                    pipeline_mode=pl.Buffered(bufs))
            except (TypeError, ValueError):
                pass
        return pl.BlockSpec(shape, index_map)

    def _run(use_pm):
        in_specs = [
            # Streamed input tile [TB, C_pad, THW]; deeper (triple) buffering
            # keeps HBM busy through the MLP epilogue on the last spatial step.
            _spec((TB, C_pad, THW), lambda b, k: (b, 0, k), _X_BUFFERS, use_pm),
            # Weights/biases: full-array blocks with constant (0,0) index —
            # VMEM resident, DMA'd once; single buffer halves their footprint.
            _spec(w1p.shape, lambda b, k: (0, 0), 1, use_pm),
            _spec(b1p.shape, lambda b, k: (0, 0), 1, use_pm),
            _spec(w2p.shape, lambda b, k: (0, 0), 1, use_pm),
            _spec(b2p.shape, lambda b, k: (0, 0), 1, use_pm),
            _spec(w3p.shape, lambda b, k: (0, 0), 1, use_pm),
            _spec(b3p.shape, lambda b, k: (0, 0), 1, use_pm),
        ]
        return pl.pallas_call(
            kernel,
            out_shape=jax.ShapeDtypeStruct((B_pad, NCp), jnp.float32),
            grid_spec=pltpu.PrefetchScalarGridSpec(
                num_scalar_prefetch=0,
                grid=grid,
                in_specs=in_specs,
                out_specs=pl.BlockSpec((TB, NCp), lambda b, k: (b, 0)),
                scratch_shapes=[pltpu.VMEM((TB, C_pad), jnp.float32)],
            ),
            compiler_params=pltpu.CompilerParams(
                dimension_semantics=("parallel", "arbitrary"),
                vmem_limit_bytes=vmem_limit,
            ),
            cost_estimate=pl.CostEstimate(
                flops=int(flops), transcendentals=0,
                bytes_accessed=int(bytes_accessed)),
        )(x3, w1p, b1p, w2p, b2p, w3p, b3p)

    try:
        out_padded = _run(use_pm=True)
    except Exception:
        # Installed JAX rejected the pipeline_mode hints — fall back to
        # default double-buffered BlockSpecs (identical math).
        out_padded = _run(use_pm=False)

    return out_padded[:B, :num_classes]


def init_params(key, conv_dim, fc_dim, num_classes):
    """nn.Linear-style init: U(-1/sqrt(fan_in), 1/sqrt(fan_in)).
    Weights stored transposed ([in, out]) vs PyTorch; biases as [1, out]."""
    ks = jax.random.split(key, 6)

    def linear(kw, kb, fan_in, fan_out):
        bound = 1.0 / jnp.sqrt(jnp.float32(fan_in))
        w = jax.random.uniform(kw, (fan_in, fan_out), jnp.float32, -bound, bound)
        b = jax.random.uniform(kb, (1, fan_out), jnp.float32, -bound, bound)
        return w, b

    w1, b1 = linear(ks[0], ks[1], conv_dim, fc_dim)
    w2, b2 = linear(ks[2], ks[3], fc_dim, fc_dim)
    w3, b3 = linear(ks[4], ks[5], fc_dim, num_classes)
    return {"w1": w1, "b1": b1, "w2": w2, "b2": b2, "w3": w3, "b3": b3}


def reference_forward(x_nchw, params):
    """Pure-JAX reference mirroring the PyTorch module (eval mode)."""
    pooled = jnp.mean(x_nchw.astype(jnp.float32), axis=(2, 3))   # pool + flatten
    h1 = jnp.maximum(pooled @ params["w1"] + params["b1"], 0.0)  # fc1 + relu
    h2 = jnp.maximum(h1 @ params["w2"] + params["b2"], 0.0)      # fc2 + relu
    return h2 @ params["w3"] + params["b3"]                      # fc3


if __name__ == "__main__":
    key = jax.random.PRNGKey(0)
    kx, kp, kx2, kx3 = jax.random.split(key, 4)

    # Shapes consistent with the module: conv_dim == channels (features =
    # Identity), fc_depth = 3.
    B, C, H, W = 2, 4, 16, 16
    conv_dim, fc_dim, num_classes = C, 32, 10
    x = jax.random.normal(kx, (B, C, H, W), jnp.float32)
    params = init_params(kp, conv_dim, fc_dim, num_classes)

    # Case 1: small shapes straight through the default (single-tile) path.
    out = jax.block_until_ready(model_forward(x, params))
    ref = reference_forward(x, params)
    assert out.shape == (B, num_classes)
    assert jnp.allclose(out, ref, atol=1e-5, rtol=1e-5), "mismatch vs reference (case 1)"

    # Case 2: larger spatial extent + odd batch; spatial_tile forces a
    # multi-step streaming reduction (spatial grid axis > 1) so the
    # accumulator init/finalize path is exercised.
    B2, H2, W2 = 3, 32, 32
    x2 = jax.random.normal(kx2, (B2, C, H2, W2), jnp.float32)
    out2 = jax.block_until_ready(model_forward(x2, params, spatial_tile=256))
    ref2 = reference_forward(x2, params)
    assert out2.shape == (B2, num_classes)
    assert jnp.allclose(out2, ref2, atol=1e-4, rtol=1e-4), "mismatch vs reference (case 2)"

    # Case 3: batch large enough to split into >=2 batch tiles (feeds both
    # v7x TensorCores) + bf16 weights on the MXU path (looser tolerance).
    B3 = 20
    x3_in = jax.random.normal(kx3, (B3, C, H, W), jnp.float32)
    out3 = jax.block_until_ready(
        model_forward(x3_in, params, weight_dtype=jnp.bfloat16))
    ref3 = reference_forward(x3_in, params)
    assert out3.shape == (B3, num_classes)
    assert jnp.allclose(out3, ref3, atol=3e-2, rtol=3e-2), "mismatch vs reference (case 3)"

    # TODO(synk): training-mode nn.Dropout (stochastic mask) not implemented; eval-mode identity used.
    print("KERNEL_OK")
</pallas_src>

<mosaic_0001>
module attributes {stable_mosaic.version = 11 : i64} {
  func.func @_model_kernel(%arg0: i32, %arg1: i32, %arg2: memref<8x8x256xf32, #tpu.memory_space<vmem>>, %arg3: memref<8x128xf32, #tpu.memory_space<vmem>>, %arg4: memref<1x128xf32, #tpu.memory_space<vmem>>, %arg5: memref<128x128xf32, #tpu.memory_space<vmem>>, %arg6: memref<1x128xf32, #tpu.memory_space<vmem>>, %arg7: memref<128x128xf32, #tpu.memory_space<vmem>>, %arg8: memref<1x128xf32, #tpu.memory_space<vmem>>, %arg9: memref<8x128xf32, #tpu.memory_space<vmem>>, %arg10: memref<8x8xf32, #tpu.memory_space<vmem>>) attributes {dimension_semantics = [#tpu.dimension_semantics<parallel>, #tpu.dimension_semantics<arbitrary>], iteration_bounds = array<i64: 1, 1>, scalar_prefetch = 0 : i64, scratch_operands = 1 : i64, tpu.core_type = #tpu.core_type<tc>, window_params = [{transform_indices = @transform_0, window_bounds = array<i64: 8, 8, 256>}, {pipeline_mode = #tpu.pipeline_mode<synchronous>, transform_indices = @transform_1, window_bounds = array<i64: 8, 128>}, {pipeline_mode = #tpu.pipeline_mode<synchronous>, transform_indices = @transform_2, window_bounds = array<i64: 1, 128>}, {pipeline_mode = #tpu.pipeline_mode<synchronous>, transform_indices = @transform_3, window_bounds = array<i64: 128, 128>}, {pipeline_mode = #tpu.pipeline_mode<synchronous>, transform_indices = @transform_4, window_bounds = array<i64: 1, 128>}, {pipeline_mode = #tpu.pipeline_mode<synchronous>, transform_indices = @transform_5, window_bounds = array<i64: 128, 128>}, {pipeline_mode = #tpu.pipeline_mode<synchronous>, transform_indices = @transform_6, window_bounds = array<i64: 1, 128>}, {transform_indices = @transform_7, window_bounds = array<i64: 8, 128>}]} {
    %c0_i32 = arith.constant 0 : i32
    %0 = arith.cmpi eq, %arg1, %c0_i32 : i32
    %1 = arith.extui %0 : i1 to i32
    %c0_i32_0 = arith.constant 0 : i32
    %2 = arith.cmpi ne, %1, %c0_i32_0 : i32
    scf.if %2 {
      %cst_9 = arith.constant 0.000000e+00 : f32
      %11 = vector.broadcast %cst_9 : f32 to vector<8x8xf32>
      %c0_10 = arith.constant 0 : index
      %c0_11 = arith.constant 0 : index
      %12 = vector.load %arg10[%c0_10, %c0_11] : memref<8x8xf32, #tpu.memory_space<vmem>>, vector<8x8xf32>
      tpu.vector_store %arg10[%c0_10, %c0_11], %11 {strides = array<i32>} : memref<8x8xf32, #tpu.memory_space<vmem>>, vector<8x8xf32>,
    } else {
    }
    %c0 = arith.constant 0 : index
    %c0_1 = arith.constant 0 : index
    %c0_2 = arith.constant 0 : index
    %3 = vector.load %arg2[%c0, %c0_1, %c0_2] : memref<8x8x256xf32, #tpu.memory_space<vmem>>, vector<8x8x256xf32>
    %c0_3 = arith.constant 0 : index
    %c0_4 = arith.constant 0 : index
    %4 = vector.load %arg10[%c0_3, %c0_4] : memref<8x8xf32, #tpu.memory_space<vmem>>, vector<8x8xf32>
    %cst = arith.constant dense<0.000000e+00> : vector<8x8xf32>
    %5 = vector.multi_reduction <add>, %3, %cst [2] : vector<8x8x256xf32> to vector<8x8xf32>
    %6 = arith.addf %4, %5 : vector<8x8xf32>
    %c0_5 = arith.constant 0 : index
    %c0_6 = arith.constant 0 : index
    %7 = vector.load %arg10[%c0_5, %c0_6] : memref<8x8xf32, #tpu.memory_space<vmem>>, vector<8x8xf32>
    tpu.vector_store %arg10[%c0_5, %c0_6], %6 {strides = array<i32>} : memref<8x8xf32, #tpu.memory_space<vmem>>, vector<8x8xf32>,
    %c0_i32_7 = arith.constant 0 : i32
    %8 = arith.cmpi eq, %arg1, %c0_i32_7 : i32
    %9 = arith.extui %8 : i1 to i32
    %c0_i32_8 = arith.constant 0 : i32
    %10 = arith.cmpi ne, %9, %c0_i32_8 : i32
    scf.if %10 {
      %c0_9 = arith.constant 0 : index
      %c0_10 = arith.constant 0 : index
      %11 = vector.load %arg10[%c0_9, %c0_10] : memref<8x8xf32, #tpu.memory_space<vmem>>, vector<8x8xf32>
      %cst_11 = arith.constant 3.906250e-03 : f32
      %12 = vector.broadcast %cst_11 : f32 to vector<8x8xf32>
      %13 = arith.mulf %11, %12 : vector<8x8xf32>
      %c0_12 = arith.constant 0 : index
      %c0_13 = arith.constant 0 : index
      %14 = vector.load %arg3[%c0_12, %c0_13] : memref<8x128xf32, #tpu.memory_space<vmem>>, vector<8x128xf32>
      %cst_14 = arith.constant dense<0.000000e+00> : vector<8x128xf32>
      %15 = tpu.matmul %13, %14, %cst_14 {dimension_numbers = #tpu.dot_dimension_numbers<[1], [0], [0], [1], [0, 0, 1, 1], [], []>} : vector<8x8xf32>, vector<8x128xf32>, vector<8x128xf32> -> vector<8x128xf32>
      %c0_15 = arith.constant 0 : index
      %c0_16 = arith.constant 0 : index
      %16 = vector.load %arg4[%c0_15, %c0_16] : memref<1x128xf32, #tpu.memory_space<vmem>>, vector<1x128xf32>
      %17 = vector.broadcast %16 : vector<1x128xf32> to vector<8x128xf32>
      %18 = arith.addf %15, %17 : vector<8x128xf32>
      %cst_17 = arith.constant 0.000000e+00 : f32
      %19 = vector.broadcast %cst_17 : f32 to vector<8x128xf32>
      %20 = arith.maximumf %18, %19 : vector<8x128xf32>
      %c0_18 = arith.constant 0 : index
      %c0_19 = arith.constant 0 : index
      %21 = vector.load %arg5[%c0_18, %c0_19] : memref<128x128xf32, #tpu.memory_space<vmem>>, vector<128x128xf32>
      %cst_20 = arith.constant dense<0.000000e+00> : vector<8x128xf32>
      %22 = tpu.matmul %20, %21, %cst_20 {dimension_numbers = #tpu.dot_dimension_numbers<[1], [0], [0], [1], [0, 0, 1, 1], [], []>} : vector<8x128xf32>, vector<128x128xf32>, vector<8x128xf32> -> vector<8x128xf32>
      %c0_21 = arith.constant 0 : index
      %c0_22 = arith.constant 0 : index
      %23 = vector.load %arg6[%c0_21, %c0_22] : memref<1x128xf32, #tpu.memory_space<vmem>>, vector<1x128xf32>
      %24 = vector.broadcast %23 : vector<1x128xf32> to vector<8x128xf32>
      %25 = arith.addf %22, %24 : vector<8x128xf32>
      %cst_23 = arith.constant 0.000000e+00 : f32
      %26 = vector.broadcast %cst_23 : f32 to vector<8x128xf32>
      %27 = arith.maximumf %25, %26 : vector<8x128xf32>
      %c0_24 = arith.constant 0 : index
      %c0_25 = arith.constant 0 : index
      %28 = vector.load %arg7[%c0_24, %c0_25] : memref<128x128xf32, #tpu.memory_space<vmem>>, vector<128x128xf32>
      %cst_26 = arith.constant dense<0.000000e+00> : vector<8x128xf32>
      %29 = tpu.matmul %27, %28, %cst_26 {dimension_numbers = #tpu.dot_dimension_numbers<[1], [0], [0], [1], [0, 0, 1, 1], [], []>} : vector<8x128xf32>, vector<128x128xf32>, vector<8x128xf32> -> vector<8x128xf32>
      %c0_27 = arith.constant 0 : index
      %c0_28 = arith.constant 0 : index
      %30 = vector.load %arg8[%c0_27, %c0_28] : memref<1x128xf32, #tpu.memory_space<vmem>>, vector<1x128xf32>
      %31 = vector.broadcast %30 : vector<1x128xf32> to vector<8x128xf32>
      %32 = arith.addf %29, %31 : vector<8x128xf32>
      %c0_29 = arith.constant 0 : index
      %c0_30 = arith.constant 0 : index
      %33 = vector.load %arg9[%c0_29, %c0_30] : memref<8x128xf32, #tpu.memory_space<vmem>>, vector<8x128xf32>
      tpu.vector_store %arg9[%c0_29, %c0_30], %32 {strides = array<i32>} : memref<8x128xf32, #tpu.memory_space<vmem>>, vector<8x128xf32>,
    } else {
    }
    return
  }
  func.func @transform_0(%arg0: i32, %arg1: i32) -> (i32, i32, i32) {
    %c0_i32 = arith.constant 0 : i32
    %c0_i32_0 = arith.constant 0 : i32
    return %arg0, %c0_i32, %arg1 : i32, i32, i32
  }
  func.func @transform_1(%arg0: i32, %arg1: i32) -> (i32, i32) {
    %c0_i32 = arith.constant 0 : i32
    %c0_i32_0 = arith.constant 0 : i32
    %c0_i32_1 = arith.constant 0 : i32
    return %c0_i32, %c0_i32_0 : i32, i32
  }
  func.func @transform_2(%arg0: i32, %arg1: i32) -> (i32, i32) {
    %c0_i32 = arith.constant 0 : i32
    %c0_i32_0 = arith.constant 0 : i32
    %c0_i32_1 = arith.constant 0 : i32
    return %c0_i32, %c0_i32_0 : i32, i32
  }
  func.func @transform_3(%arg0: i32, %arg1: i32) -> (i32, i32) {
    %c0_i32 = arith.constant 0 : i32
    %c0_i32_0 = arith.constant 0 : i32
    %c0_i32_1 = arith.constant 0 : i32
    return %c0_i32, %c0_i32_0 : i32, i32
  }
  func.func @transform_4(%arg0: i32, %arg1: i32) -> (i32, i32) {
    %c0_i32 = arith.constant 0 : i32
    %c0_i32_0 = arith.constant 0 : i32
    %c0_i32_1 = arith.constant 0 : i32
    return %c0_i32, %c0_i32_0 : i32, i32
  }
  func.func @transform_5(%arg0: i32, %arg1: i32) -> (i32, i32) {
    %c0_i32 = arith.constant 0 : i32
    %c0_i32_0 = arith.constant 0 : i32
    %c0_i32_1 = arith.constant 0 : i32
    return %c0_i32, %c0_i32_0 : i32, i32
  }
  func.func @transform_6(%arg0: i32, %arg1: i32) -> (i32, i32) {
    %c0_i32 = arith.constant 0 : i32
    %c0_i32_0 = arith.constant 0 : i32
    %c0_i32_1 = arith.constant 0 : i32
    return %c0_i32, %c0_i32_0 : i32, i32
  }
  func.func @transform_7(%arg0: i32, %arg1: i32) -> (i32, i32) {
    %c0_i32 = arith.constant 0 : i32
    %c0_i32_0 = arith.constant 0 : i32
    return %arg0, %c0_i32 : i32, i32
  }
}

</mosaic_0001>

<llo_original>
// kernel: tpu_custom_call.1
$region0: #{tpu_custom_call.1}
  #allocation0 [shape = 'u32[]', space=smem, size = 0x4, offset = 0x4, fixed_abs, tag = 'smem constant byte address 0x4 - core index']
  #allocation1 [shape = 'u32[144,128]{1,0:T(1,128)}', space=vmem, size = 0x12000, scoped, tag = 'internal scratch']
  #allocation2 [shape = 'f32[8,8]{1,0:T(8,128)}', space=vmem, size = 0x1000, scoped, tag = 'scratch operand']
  %s0 = inlined_call_operand.hbm [shape: f32[8,8,256], index: 0, kind: input, shape index: {}]
  %s1 = inlined_call_operand.hbm [shape: f32[8,128], index: 1, kind: input, shape index: {}]
  %s2 = inlined_call_operand.vmem [shape: f32[1,128], index: 2, kind: input, shape index: {}]
  %s3 = inlined_call_operand.hbm [shape: f32[128,128], index: 3, kind: input, shape index: {}]
  %s4 = inlined_call_operand.vmem [shape: f32[1,128], index: 4, kind: input, shape index: {}]
  %s5 = inlined_call_operand.hbm [shape: f32[128,128], index: 5, kind: input, shape index: {}]
  %s6 = inlined_call_operand.vmem [shape: f32[1,128], index: 6, kind: input, shape index: {}]
  %s7 = inlined_call_operand.hbm [shape: f32[8,128], index: 7, kind: output, shape index: {}]
  %s8 = sld [smem:[#allocation0]]
  $region62: #{tpu_custom_call.1} parent=0
    _
  %s10 = ssub.s32 1, %s8
  %s11 = scalar_select 0, %s10, %s8
  $region1: #{tpu_custom_call.1} parent=0
    #allocation3 [shape = 'u8[65536]{0}', space=vmem, size = 0x10000, scoped, tag = 'input window, operand 0, single buffered']
    #allocation4 [shape = 's32[1]{0}', space=sflag, size = 0x4, scoped, tag = 'scoped memory for tpu_custom_call.1']
    #allocation5 [shape = 's32[1]{0}', space=sflag, size = 0x4, scoped, tag = 'scoped memory for tpu_custom_call.1']
    #allocation6 [shape = 'u8[4096]{0}', space=vmem, size = 0x1000, scoped, tag = 'input window, operand 1, single buffered']
    #allocation7 [shape = 's32[1]{0}', space=sflag, size = 0x4, scoped, tag = 'scoped memory for tpu_custom_call.1']
    #allocation8 [shape = 'u8[65536]{0}', space=vmem, size = 0x10000, scoped, tag = 'input window, operand 3, single buffered']
    #allocation9 [shape = 'u8[65536]{0}', space=vmem, size = 0x10000, scoped, tag = 'input window, operand 5, single buffered']
    #allocation10 [shape = 's32[1]{0}', space=sflag, size = 0x4, scoped, tag = 'scoped memory for tpu_custom_call.1']
    #allocation11 [shape = 'u8[4096]{0}', space=vmem, size = 0x1000, scoped, tag = 'output window, operand 0, single buffered']
    %12 = vsyncpa [#allocation4], 0
    %13 = vsyncpa [#allocation7], 0
    %14 = vsyncpa [#allocation10], 0
    %15 = vsyncpa [#allocation5], 0
    // Predicated region
    $region2: #{tpu_custom_call.1} parent=1 // pred_check
      _
    $region3: #{tpu_custom_call.1} parent=1 // pred_check_branch
      %17 = sbr.rel (0) target = $region5
    $region4: #{tpu_custom_call.1} parent=1 // pred_region
      %s19 = ssub.s32 2048, 2048
      %20 = vsyncadd [#allocation4], %s19
      %s21 = sshll.u32 [#allocation3], 4
      %s22 = int_to_ptr.vmem [resolvable:$true] %s21
      %27 = dma.hbm_to_vmem [thread:$0]  %s0, 2048, %s22, [#allocation4], 256, 256, 16
    $region5: #{tpu_custom_call.1} parent=1 // pred_fallthru
      _
    // Predicated region
    $region6: #{tpu_custom_call.1} parent=1 // pred_check
      _
    $region7: #{tpu_custom_call.1} parent=1 // pred_check_branch
      %29 = sbr.rel (0) target = $region9
    $region8: #{tpu_custom_call.1} parent=1 // pred_region
      %s31 = ssub.s32 128, 128
      %32 = vsyncadd [#allocation7], %s31
      %s34 = sshll.u32 [#allocation6], 4
      %s35 = int_to_ptr.vmem [resolvable:$true] %s34
      %37 = dma.hbm_to_vmem [thread:$0]  %s1, 128, %s35, [#allocation7]
    $region9: #{tpu_custom_call.1} parent=1 // pred_fallthru
      _
    // Predicated region
    $region10: #{tpu_custom_call.1} parent=1 // pred_check
      _
    $region11: #{tpu_custom_call.1} parent=1 // pred_check_branch
      %39 = sbr.rel (0) target = $region13
    $region12: #{tpu_custom_call.1} parent=1 // pred_region
      _
    $region13: #{tpu_custom_call.1} parent=1 // pred_fallthru
      _
    // Predicated region
    $region14: #{tpu_custom_call.1} parent=1 // pred_check
      _
    $region15: #{tpu_custom_call.1} parent=1 // pred_check_branch
      %41 = sbr.rel (0) target = $region17
    $region16: #{tpu_custom_call.1} parent=1 // pred_region
      %s43 = ssub.s32 2048, 2048
      %44 = vsyncadd [#allocation7], %s43
      %s45 = sshll.u32 [#allocation8], 4
      %s46 = int_to_ptr.vmem [resolvable:$true] %s45
      %51 = dma.hbm_to_vmem [thread:$0]  %s3, 2048, %s46, [#allocation7], 128, 128, 8
    $region17: #{tpu_custom_call.1} parent=1 // pred_fallthru
      _
    // Predicated region
    $region18: #{tpu_custom_call.1} parent=1 // pred_check
      _
    $region19: #{tpu_custom_call.1} parent=1 // pred_check_branch
      %53 = sbr.rel (0) target = $region21
    $region20: #{tpu_custom_call.1} parent=1 // pred_region
      _
    $region21: #{tpu_custom_call.1} parent=1 // pred_fallthru
      _
    // Predicated region
    $region22: #{tpu_custom_call.1} parent=1 // pred_check
      _
    $region23: #{tpu_custom_call.1} parent=1 // pred_check_branch
      %55 = sbr.rel (0) target = $region25
    $region24: #{tpu_custom_call.1} parent=1 // pred_region
      %s57 = ssub.s32 2048, 2048
      %58 = vsyncadd [#allocation10], %s57
      %s59 = sshll.u32 [#allocation9], 4
      %s60 = int_to_ptr.vmem [resolvable:$true] %s59
      %65 = dma.hbm_to_vmem [thread:$0]  %s5, 2048, %s60, [#allocation10], 128, 128, 8
    $region25: #{tpu_custom_call.1} parent=1 // pred_fallthru
      _
    // Predicated region
    $region26: #{tpu_custom_call.1} parent=1 // pred_check
      _
    $region27: #{tpu_custom_call.1} parent=1 // pred_check_branch
      %67 = sbr.rel (0) target = $region29
    $region28: #{tpu_custom_call.1} parent=1 // pred_region
      _
    $region29: #{tpu_custom_call.1} parent=1 // pred_fallthru
      _
    // Predicated region
    $region30: #{tpu_custom_call.1} parent=1 // pred_check
      _
    $region31: #{tpu_custom_call.1} parent=1 // pred_check_branch
      %69 = sbr.rel (0) target = $region33
    $region32: #{tpu_custom_call.1} parent=1 // pred_region
      %70 = dma.done [#allocation4], 2048
    $region33: #{tpu_custom_call.1} parent=1 // pred_fallthru
      _
    // Predicated region
    $region34: #{tpu_custom_call.1} parent=1 // pred_check
      _
    $region35: #{tpu_custom_call.1} parent=1 // pred_check_branch
      %72 = sbr.rel (0) target = $region37
    $region36: #{tpu_custom_call.1} parent=1 // pred_region
      %73 = dma.done [#allocation7], 128
    $region37: #{tpu_custom_call.1} parent=1 // pred_fallthru
      _
    // Predicated region
    $region38: #{tpu_custom_call.1} parent=1 // pred_check
      _
    $region39: #{tpu_custom_call.1} parent=1 // pred_check_branch
      %75 = sbr.rel (0) target = $region41
    $region40: #{tpu_custom_call.1} parent=1 // pred_region
      %76 = dma.done [#allocation7], 2048
    $region41: #{tpu_custom_call.1} parent=1 // pred_fallthru
      _
    // Predicated region
    $region42: #{tpu_custom_call.1} parent=1 // pred_check
      _
    $region43: #{tpu_custom_call.1} parent=1 // pred_check_branch
      %78 = sbr.rel (0) target = $region45
    $region44: #{tpu_custom_call.1} parent=1 // pred_region
      %79 = dma.done [#allocation10], 2048
    $region45: #{tpu_custom_call.1} parent=1 // pred_fallthru
      _
    %p80 = scmp.eq.s32.totalorder 0, 0
    // Predicated region
    $region46: #{tpu_custom_call.1} parent=1 // pred_check
      %p81 = pneg %p80
    $region47: #{tpu_custom_call.1} parent=1 // pred_check_branch
      %83 = sbr.rel (%p81) target = $region49
    $region48: #{tpu_custom_call.1} parent=1 // pred_region
      %vm84 = vcmask 64512
      %85 = vst.msk [vmem:[#allocation2] sm:$0xff] %vm84, 0.0
    $region49: #{tpu_custom_call.1} parent=1 // pred_fallthru
      _
    %v86 = vld [vmem:[#allocation3] sm:$0xff]
    %v87 = vld [vmem:[#allocation3 + $0x8] sm:$0xff]
    %v88 = vld [vmem:[#allocation3 + $0x10] sm:$0xff]
    %v89 = vld [vmem:[#allocation3 + $0x18] sm:$0xff]
    %v90 = vld [vmem:[#allocation3 + $0x20] sm:$0xff]
    %v91 = vld [vmem:[#allocation3 + $0x28] sm:$0xff]
    %v92 = vld [vmem:[#allocation3 + $0x30] sm:$0xff]
    %v93 = vld [vmem:[#allocation3 + $0x38] sm:$0xff]
    %v94 = vld [vmem:[#allocation3 + $0x40] sm:$0xff]
    %v95 = vld [vmem:[#allocation3 + $0x48] sm:$0xff]
    %v96 = vld [vmem:[#allocation3 + $0x50] sm:$0xff]
    %v97 = vld [vmem:[#allocation3 + $0x58] sm:$0xff]
    %v98 = vld [vmem:[#allocation3 + $0x60] sm:$0xff]
    %v99 = vld [vmem:[#allocation3 + $0x68] sm:$0xff]
    %v100 = vld [vmem:[#allocation3 + $0x70] sm:$0xff]
    %v101 = vld [vmem:[#allocation3 + $0x78] sm:$0xff]
    %v102 = vld [vmem:[#allocation2] sm:$0xff]
    %v103 = vadd.f32 %v86, %v87
    %104 = vadd.xlane.f32.xlu0 %v103
    %v105 = vpop.xlane.xlu0 %104
    %v106 = vadd.f32 %v88, %v89
    %107 = vadd.xlane.f32.xlu0 %v106
    %v108 = vpop.xlane.xlu0 %107
    %v109 = vadd.f32 %v90, %v91
    %110 = vadd.xlane.f32.xlu0 %v109
    %v111 = vpop.xlane.xlu0 %110
    %v112 = vadd.f32 %v92, %v93
    %113 = vadd.xlane.f32.xlu0 %v112
    %v114 = vpop.xlane.xlu0 %113
    %v115 = vadd.f32 %v94, %v95
    %116 = vadd.xlane.f32.xlu0 %v115
    %v117 = vpop.xlane.xlu0 %116
    %v118 = vadd.f32 %v96, %v97
    %119 = vadd.xlane.f32.xlu0 %v118
    %v120 = vpop.xlane.xlu0 %119
    %v121 = vadd.f32 %v98, %v99
    %122 = vadd.xlane.f32.xlu0 %v121
    %v123 = vpop.xlane.xlu0 %122
    %v124 = vadd.f32 %v100, %v101
    %125 = vadd.xlane.f32.xlu0 %v124
    %v126 = vpop.xlane.xlu0 %125
    %v135 = vlaneseq
    %v136 = vand.u32 %v135, 127
    %v137 = vlaneseq
    %v138 = vshrl.u32 %v137, 7
    %v139 = vsub.s32 %v136, %v138
    %v140 = vrot.slane %v105, %v139
    %v141 = vlaneseq
    %v142 = vshrl.u32 %v141, 7
    %v143 = vsub.s32 %v136, %v142
    %v144 = vrot.slane %v108, %v143
    %v145 = vlaneseq
    %v146 = vshrl.u32 %v145, 7
    %v147 = vsub.s32 %v136, %v146
    %v148 = vrot.slane %v111, %v147
    %v149 = vlaneseq
    %v150 = vshrl.u32 %v149, 7
    %v151 = vsub.s32 %v136, %v150
    %v152 = vrot.slane %v114, %v151
    %v153 = vlaneseq
    %v154 = vshrl.u32 %v153, 7
    %v155 = vsub.s32 %v136, %v154
    %v156 = vrot.slane %v117, %v155
    %v157 = vlaneseq
    %v158 = vshrl.u32 %v157, 7
    %v159 = vsub.s32 %v136, %v158
    %v160 = vrot.slane %v120, %v159
    %v161 = vlaneseq
    %v162 = vshrl.u32 %v161, 7
    %v163 = vsub.s32 %v136, %v162
    %v164 = vrot.slane %v123, %v163
    %v165 = vlaneseq
    %v166 = vshrl.u32 %v165, 7
    %v167 = vsub.s32 %v136, %v166
    %v168 = vrot.slane %v126, %v167
    %vm169 = vcmask 1041409
    %v170 = vsel %vm169, %v144, %v140
    %vm171 = vcmask 1042434
    %v172 = vsel %vm171, %v148, %v170
    %vm173 = vcmask 1043459
    %v174 = vsel %vm173, %v152, %v172
    %vm175 = vcmask 1044484
    %v176 = vsel %vm175, %v156, %v174
    %vm177 = vcmask 1045509
    %v178 = vsel %vm177, %v160, %v176
    %vm179 = vcmask 1046534
    %v180 = vsel %vm179, %v164, %v178
    %vm181 = vcmask 1047559
    %v182 = vsel %vm181, %v168, %v180
    %v184 = vadd.f32 %v102, %v182
    %vm185 = vcmask 64512
    %186 = vst.msk [vmem:[#allocation2] sm:$0xff] %vm185, %v184
    // Predicated region
    $region50: #{tpu_custom_call.1} parent=1 // pred_check
      %p187 = pneg %p80
    $region51: #{tpu_custom_call.1} parent=1 // pred_check_branch
      %189 = sbr.rel (%p187) target = $region53
    $region52: #{tpu_custom_call.1} parent=1 // pred_region
      %v190 = vld [vmem:[#allocation2] sm:$0xff]
      %v191 = vmul.f32 %v190, 0.00390625
      %v192 = vld [vmem:[#allocation6] sm:$0xff]
      %v193 = vld [vmem:[%s2] sm:$0x1]
      %v195 = vlaneseq
      %v196 = vshrl.u32 %v195, 7
      %v197 = vsub.s32 0, %v196
      %v198 = vrot.slane %v193, %v197
      %v201 = vsel %vm185, %v191, 0
      %203 = vmatprep.subr.mxu0 0.0
      %204 = vmatpush1.msra.mxu0 0.0
      %205 = vmatprep.subr.mxu0 0.0
      %206 = vmatpush1.msra.mxu0 0.0
      %207 = vmatprep.subr.mxu0 0.0
      %208 = vmatpush1.msra.mxu0 0.0
      %209 = vmatprep.subr.mxu0 0.0
      %210 = vmatpush1.msra.mxu0 0.0
      %211 = vmatprep.subr.mxu0 0.0
      %212 = vmatpush1.msra.mxu0 0.0
      %213 = vmatprep.subr.mxu0 0.0
      %214 = vmatpush1.msra.mxu0 0.0
      %215 = vmatprep.subr.mxu0 0.0
      %216 = vmatpush1.msra.mxu0 0.0
      %217 = vmatprep.subr.mxu0 0.0
      %218 = vmatpush1.msra.mxu0 0.0
      %219 = vmatprep.subr.mxu0 0.0
      %220 = vmatpush1.msra.mxu0 0.0
      %221 = vmatprep.subr.mxu0 0.0
      %222 = vmatpush1.msra.mxu0 0.0
      %223 = vmatprep.subr.mxu0 0.0
      %224 = vmatpush1.msra.mxu0 0.0
      %225 = vmatprep.subr.mxu0 0.0
      %226 = vmatpush1.msra.mxu0 0.0
      %227 = vmatprep.subr.mxu0 0.0
      %228 = vmatpush1.msra.mxu0 0.0
      %229 = vmatprep.subr.mxu0 0.0
      %230 = vmatpush1.msra.mxu0 0.0
      %231 = vmatprep.subr.mxu0 0.0
      %232 = vmatpush1.msra.mxu0 0.0
      %233 = vmatprep.subr.mxu0 0.0
      %234 = vmatpush1.msra.mxu0 %v192
      %235 = vmatprep.subr.mxu0 0.0
      %236 = vmatpush2.msra.mxu0 0.0
      %237 = vmatprep.subr.mxu0 0.0
      %238 = vmatpush2.msra.mxu0 0.0
      %239 = vmatprep.subr.mxu0 0.0
      %240 = vmatpush2.msra.mxu0 0.0
      %241 = vmatprep.subr.mxu0 0.0
      %242 = vmatpush2.msra.mxu0 0.0
      %243 = vmatprep.subr.mxu0 0.0
      %244 = vmatpush2.msra.mxu0 0.0
      %245 = vmatprep.subr.mxu0 0.0
      %246 = vmatpush2.msra.mxu0 0.0
      %247 = vmatprep.subr.mxu0 0.0
      %248 = vmatpush2.msra.mxu0 0.0
      %249 = vmatprep.subr.mxu0 0.0
      %250 = vmatpush2.msra.mxu0 0.0
      %251 = vmatprep.subr.mxu0 0.0
      %252 = vmatpush2.msra.mxu0 0.0
      %253 = vmatprep.subr.mxu0 0.0
      %254 = vmatpush2.msra.mxu0 0.0
      %255 = vmatprep.subr.mxu0 0.0
      %256 = vmatpush2.msra.mxu0 0.0
      %257 = vmatprep.subr.mxu0 0.0
      %258 = vmatpush2.msra.mxu0 0.0
      %259 = vmatprep.subr.mxu0 0.0
      %260 = vmatpush2.msra.mxu0 0.0
      %261 = vmatprep.subr.mxu0 0.0
      %262 = vmatpush2.msra.mxu0 0.0
      %263 = vmatprep.subr.mxu0 0.0
      %264 = vmatpush2.msra.mxu0 0.0
      %265 = vmatprep.subr.mxu0 0.0
      %266 = vmatpush2.msra.mxu0 0.0
      %267 = vmatprep.mubr.f32.mxu0 0.0
      %268 = vmatmul.mubr.f32.gmra.mxu0 %v201
      %v269 = vpop.f32.mrf.mxu0
      %v270 = vadd.f32 %v198, %v269
      %v271 = vpop.f32.mrf.mxu0
      %272 = vdwg.mxu0
      %v273 = vmax.f32 %v270, 0.0
      %v274 = vld [vmem:[#allocation8] sm:$0xff]
      %v275 = vld [vmem:[#allocation8 + $0x8] sm:$0xff]
      %v276 = vld [vmem:[#allocation8 + $0x10] sm:$0xff]
      %v277 = vld [vmem:[#allocation8 + $0x18] sm:$0xff]
      %v278 = vld [vmem:[#allocation8 + $0x20] sm:$0xff]
      %v279 = vld [vmem:[#allocation8 + $0x28] sm:$0xff]
      %v280 = vld [vmem:[#allocation8 + $0x30] sm:$0xff]
      %v281 = vld [vmem:[#allocation8 + $0x38] sm:$0xff]
      %v282 = vld [vmem:[#allocation8 + $0x40] sm:$0xff]
      %v283 = vld [vmem:[#allocation8 + $0x48] sm:$0xff]
      %v284 = vld [vmem:[#allocation8 + $0x50] sm:$0xff]
      %v285 = vld [vmem:[#allocation8 + $0x58] sm:$0xff]
      %v286 = vld [vmem:[#allocation8 + $0x60] sm:$0xff]
      %v287 = vld [vmem:[#allocation8 + $0x68] sm:$0xff]
      %v288 = vld [vmem:[#allocation8 + $0x70] sm:$0xff]
      %v289 = vld [vmem:[#allocation8 + $0x78] sm:$0xff]
      %v290 = vld [vmem:[%s4] sm:$0x1]
      %v292 = vlaneseq
      %v293 = vshrl.u32 %v292, 7
      %v294 = vsub.s32 0, %v293
      %v295 = vrot.slane %v290, %v294
      %297 = vmatprep.subr.mxu0 0.0
      %298 = vmatpush1.msra.mxu0 %v289
      %299 = vmatprep.subr.mxu0 0.0
      %300 = vmatpush1.msra.mxu0 %v288
      %301 = vmatprep.subr.mxu0 0.0
      %302 = vmatpush1.msra.mxu0 %v287
      %303 = vmatprep.subr.mxu0 0.0
      %304 = vmatpush1.msra.mxu0 %v286
      %305 = vmatprep.subr.mxu0 0.0
      %306 = vmatpush1.msra.mxu0 %v285
      %307 = vmatprep.subr.mxu0 0.0
      %308 = vmatpush1.msra.mxu0 %v284
      %309 = vmatprep.subr.mxu0 0.0
      %310 = vmatpush1.msra.mxu0 %v283
      %311 = vmatprep.subr.mxu0 0.0
      %312 = vmatpush1.msra.mxu0 %v282
      %313 = vmatprep.subr.mxu0 0.0
      %314 = vmatpush1.msra.mxu0 %v281
      %315 = vmatprep.subr.mxu0 0.0
      %316 = vmatpush1.msra.mxu0 %v280
      %317 = vmatprep.subr.mxu0 0.0
      %318 = vmatpush1.msra.mxu0 %v279
      %319 = vmatprep.subr.mxu0 0.0
      %320 = vmatpush1.msra.mxu0 %v278
      %321 = vmatprep.subr.mxu0 0.0
      %322 = vmatpush1.msra.mxu0 %v277
      %323 = vmatprep.subr.mxu0 0.0
      %324 = vmatpush1.msra.mxu0 %v276
      %325 = vmatprep.subr.mxu0 0.0
      %326 = vmatpush1.msra.mxu0 %v275
      %327 = vmatprep.subr.mxu0 0.0
      %328 = vmatpush1.msra.mxu0 %v274
      %329 = vmatprep.subr.mxu0 0.0
      %330 = vmatpush2.msra.mxu0 0.0
      %331 = vmatprep.subr.mxu0 0.0
      %332 = vmatpush2.msra.mxu0 0.0
      %333 = vmatprep.subr.mxu0 0.0
      %334 = vmatpush2.msra.mxu0 0.0
      %335 = vmatprep.subr.mxu0 0.0
      %336 = vmatpush2.msra.mxu0 0.0
      %337 = vmatprep.subr.mxu0 0.0
      %338 = vmatpush2.msra.mxu0 0.0
      %339 = vmatprep.subr.mxu0 0.0
      %340 = vmatpush2.msra.mxu0 0.0
      %341 = vmatprep.subr.mxu0 0.0
      %342 = vmatpush2.msra.mxu0 0.0
      %343 = vmatprep.subr.mxu0 0.0
      %344 = vmatpush2.msra.mxu0 0.0
      %345 = vmatprep.subr.mxu0 0.0
      %346 = vmatpush2.msra.mxu0 0.0
      %347 = vmatprep.subr.mxu0 0.0
      %348 = vmatpush2.msra.mxu0 0.0
      %349 = vmatprep.subr.mxu0 0.0
      %350 = vmatpush2.msra.mxu0 0.0
      %351 = vmatprep.subr.mxu0 0.0
      %352 = vmatpush2.msra.mxu0 0.0
      %353 = vmatprep.subr.mxu0 0.0
      %354 = vmatpush2.msra.mxu0 0.0
      %355 = vmatprep.subr.mxu0 0.0
      %356 = vmatpush2.msra.mxu0 0.0
      %357 = vmatprep.subr.mxu0 0.0
      %358 = vmatpush2.msra.mxu0 0.0
      %359 = vmatprep.subr.mxu0 0.0
      %360 = vmatpush2.msra.mxu0 0.0
      %361 = vmatprep.mubr.f32.mxu0 0.0
      %362 = vmatmul.mubr.f32.gmra.mxu0 %v273
      %v363 = vpop.f32.mrf.mxu0
      %v364 = vadd.f32 %v295, %v363
      %v365 = vpop.f32.mrf.mxu0
      %366 = vdwg.mxu0
      %v367 = vmax.f32 %v364, 0.0
      %v368 = vld [vmem:[#allocation9] sm:$0xff]
      %v369 = vld [vmem:[#allocation9 + $0x8] sm:$0xff]
      %v370 = vld [vmem:[#allocation9 + $0x10] sm:$0xff]
      %v371 = vld [vmem:[#allocation9 + $0x18] sm:$0xff]
      %v372 = vld [vmem:[#allocation9 + $0x20] sm:$0xff]
      %v373 = vld [vmem:[#allocation9 + $0x28] sm:$0xff]
      %v374 = vld [vmem:[#allocation9 + $0x30] sm:$0xff]
      %v375 = vld [vmem:[#allocation9 + $0x38] sm:$0xff]
      %v376 = vld [vmem:[#allocation9 + $0x40] sm:$0xff]
      %v377 = vld [vmem:[#allocation9 + $0x48] sm:$0xff]
      %v378 = vld [vmem:[#allocation9 + $0x50] sm:$0xff]
      %v379 = vld [vmem:[#allocation9 + $0x58] sm:$0xff]
      %v380 = vld [vmem:[#allocation9 + $0x60] sm:$0xff]
      %v381 = vld [vmem:[#allocation9 + $0x68] sm:$0xff]
      %v382 = vld [vmem:[#allocation9 + $0x70] sm:$0xff]
      %v383 = vld [vmem:[#allocation9 + $0x78] sm:$0xff]
      %v384 = vld [vmem:[%s6] sm:$0x1]
      %v386 = vlaneseq
      %v387 = vshrl.u32 %v386, 7
      %v388 = vsub.s32 0, %v387
      %v389 = vrot.slane %v384, %v388
      %391 = vmatprep.subr.mxu0 0.0
      %392 = vmatpush1.msra.mxu0 %v383
      %393 = vmatprep.subr.mxu0 0.0
      %394 = vmatpush1.msra.mxu0 %v382
      %395 = vmatprep.subr.mxu0 0.0
      %396 = vmatpush1.msra.mxu0 %v381
      %397 = vmatprep.subr.mxu0 0.0
      %398 = vmatpush1.msra.mxu0 %v380
      %399 = vmatprep.subr.mxu0 0.0
      %400 = vmatpush1.msra.mxu0 %v379
      %401 = vmatprep.subr.mxu0 0.0
      %402 = vmatpush1.msra.mxu0 %v378
      %403 = vmatprep.subr.mxu0 0.0
      %404 = vmatpush1.msra.mxu0 %v377
      %405 = vmatprep.subr.mxu0 0.0
      %406 = vmatpush1.msra.mxu0 %v376
      %407 = vmatprep.subr.mxu0 0.0
      %408 = vmatpush1.msra.mxu0 %v375
      %409 = vmatprep.subr.mxu0 0.0
      %410 = vmatpush1.msra.mxu0 %v374
      %411 = vmatprep.subr.mxu0 0.0
      %412 = vmatpush1.msra.mxu0 %v373
      %413 = vmatprep.subr.mxu0 0.0
      %414 = vmatpush1.msra.mxu0 %v372
      %415 = vmatprep.subr.mxu0 0.0
      %416 = vmatpush1.msra.mxu0 %v371
      %417 = vmatprep.subr.mxu0 0.0
      %418 = vmatpush1.msra.mxu0 %v370
      %419 = vmatprep.subr.mxu0 0.0
      %420 = vmatpush1.msra.mxu0 %v369
      %421 = vmatprep.subr.mxu0 0.0
      %422 = vmatpush1.msra.mxu0 %v368
      %423 = vmatprep.subr.mxu0 0.0
      %424 = vmatpush2.msra.mxu0 0.0
      %425 = vmatprep.subr.mxu0 0.0
      %426 = vmatpush2.msra.mxu0 0.0
      %427 = vmatprep.subr.mxu0 0.0
      %428 = vmatpush2.msra.mxu0 0.0
      %429 = vmatprep.subr.mxu0 0.0
      %430 = vmatpush2.msra.mxu0 0.0
      %431 = vmatprep.subr.mxu0 0.0
      %432 = vmatpush2.msra.mxu0 0.0
      %433 = vmatprep.subr.mxu0 0.0
      %434 = vmatpush2.msra.mxu0 0.0
      %435 = vmatprep.subr.mxu0 0.0
      %436 = vmatpush2.msra.mxu0 0.0
      %437 = vmatprep.subr.mxu0 0.0
      %438 = vmatpush2.msra.mxu0 0.0
      %439 = vmatprep.subr.mxu0 0.0
      %440 = vmatpush2.msra.mxu0 0.0
      %441 = vmatprep.subr.mxu0 0.0
      %442 = vmatpush2.msra.mxu0 0.0
      %443 = vmatprep.subr.mxu0 0.0
      %444 = vmatpush2.msra.mxu0 0.0
      %445 = vmatprep.subr.mxu0 0.0
      %446 = vmatpush2.msra.mxu0 0.0
      %447 = vmatprep.subr.mxu0 0.0
      %448 = vmatpush2.msra.mxu0 0.0
      %449 = vmatprep.subr.mxu0 0.0
      %450 = vmatpush2.msra.mxu0 0.0
      %451 = vmatprep.subr.mxu0 0.0
      %452 = vmatpush2.msra.mxu0 0.0
      %453 = vmatprep.subr.mxu0 0.0
      %454 = vmatpush2.msra.mxu0 0.0
      %455 = vmatprep.mubr.f32.mxu0 0.0
      %456 = vmatmul.mubr.f32.gmra.mxu0 %v367
      %v457 = vpop.f32.mrf.mxu0
      %v458 = vadd.f32 %v389, %v457
      %v459 = vpop.f32.mrf.mxu0
      %460 = vdwg.mxu0
      %461 = vst [vmem:[#allocation11] sm:$0xff] %v458
    $region53: #{tpu_custom_call.1} parent=1 // pred_fallthru
      _
    // Predicated region
    $region54: #{tpu_custom_call.1} parent=1 // pred_check
      _
    $region55: #{tpu_custom_call.1} parent=1 // pred_check_branch
      %463 = sbr.rel (0) target = $region57
    $region56: #{tpu_custom_call.1} parent=1 // pred_region
      %s465 = ssub.s32 128, 128
      %466 = vsyncadd [#allocation5], %s465
      %s468 = sshll.u32 [#allocation11], 4
      %s469 = int_to_ptr.vmem [resolvable:$true] %s468
      %471 = dma.vmem_to_hbm [thread:$0]  %s469, 128, %s7, [#allocation5]
    $region57: #{tpu_custom_call.1} parent=1 // pred_fallthru
      _
    // Predicated region
    $region58: #{tpu_custom_call.1} parent=1 // pred_check
      _
    $region59: #{tpu_custom_call.1} parent=1 // pred_check_branch
      %473 = sbr.rel (0) target = $region61
    $region60: #{tpu_custom_call.1} parent=1 // pred_region
      %474 = dma.done [#allocation5], 128
    $region61: #{tpu_custom_call.1} parent=1 // pred_fallthru
      _
    %475 = vsyncpa [#allocation4], 1
    %476 = vsyncpa [#allocation7], 1
    %477 = vsyncpa [#allocation10], 1
    %478 = vsyncpa [#allocation5], 1

</llo_original>
